<compile_context>
chip_gen: v7x
topology: tpu7x:2x2x1
jax: 0.10.0
libtpu: 0.0.40
codegen_flags: <defaults>
</compile_context>

<pallas_src>
import jax
import jax.numpy as jnp
from jax import lax
from jax.experimental import pallas as pl
from jax.experimental.pallas import tpu as pltpu


def _iso_conv_kernel(xp_ref, w_ref, b_ref, o_ref):
    # xp_ref: (1, Cin, H+2, W+2)  zero-padded NCHW input tile (one batch elem)
    # w_ref : (Cout, 2*Cin)       [w0 - w1 | w1] concatenated along K
    # b_ref : (Cout, 1)
    # o_ref : (1, Cout, H*W)      lane-dense output block
    Cin = xp_ref.shape[1]
    H = xp_ref.shape[2] - 2
    W = xp_ref.shape[3] - 2

    xp = xp_ref[0]                                               # (Cin, H+2, W+2)

    # Separable 3x3 box sum (accumulator initialized from the first slice).
    hs = xp[:, :, 0:W] + xp[:, :, 1:W + 1] + xp[:, :, 2:W + 2]   # (Cin, H+2, W)
    total = hs[:, 0:H, :] + hs[:, 1:H + 1, :] + hs[:, 2:H + 2, :]  # (Cin, H, W)
    center = xp[:, 1:H + 1, 1:W + 1]                             # (Cin, H, W)

    # Fused feature tensor: concat along the (untiled) channel axis, flatten
    # spatial for a single (Cout, 2Cin) @ (2Cin, H*W) MXU matmul.
    feat = jnp.concatenate([center, total], axis=0)              # (2Cin, H, W)
    feat_flat = feat.reshape(2 * Cin, H * W)                     # (2Cin, H*W)

    out = jnp.dot(w_ref[...], feat_flat,
                  preferred_element_type=jnp.float32)            # (Cout, H*W)
    out = out + b_ref[...].astype(jnp.float32)
    o_ref[0] = out.astype(o_ref.dtype)


def isotropic_conv2d(x_nchw, weight, bias):
    """x_nchw: (N, Cin, H, W); weight: (Cout, Cin, 2); bias: (Cout,)"""
    N, Cin, H, W = x_nchw.shape
    Cout = weight.shape[0]

    w0 = weight[:, :, 0]                              # (Cout, Cin) center tap
    w1 = weight[:, :, 1]                              # (Cout, Cin) ring tap
    # Fold the ring subtraction into the weights and concatenate along K.
    w_cat = jnp.concatenate([w0 - w1, w1], axis=1)    # (Cout, 2*Cin)
    b2d = bias.reshape(Cout, 1)

    # Only a 1-pixel spatial zero-pad on the host; no layout transposes.
    xpad = jnp.pad(x_nchw, ((0, 0), (0, 0), (1, 1), (1, 1)))

    out_flat = pl.pallas_call(
        _iso_conv_kernel,
        out_shape=jax.ShapeDtypeStruct((N, Cout, H * W), x_nchw.dtype),
        grid_spec=pltpu.PrefetchScalarGridSpec(
            num_scalar_prefetch=0,
            grid=(N,),
            in_specs=[
                pl.BlockSpec((1, Cin, H + 2, W + 2), lambda n: (n, 0, 0, 0)),
                pl.BlockSpec((Cout, 2 * Cin), lambda n: (0, 0)),
                pl.BlockSpec((Cout, 1), lambda n: (0, 0)),
            ],
            out_specs=pl.BlockSpec((1, Cout, H * W), lambda n: (n, 0, 0)),
        ),
        compiler_params=pltpu.CompilerParams(
            dimension_semantics=("parallel",),
            vmem_limit_bytes=64 * 1024 * 1024),
    )(xpad, w_cat, b2d)

    return out_flat.reshape(N, Cout, H, W)


def _reference_conv(x_nchw, weight, bias):
    """Pure-JAX reference mirroring the PyTorch build_filter + conv2d."""
    Cout, Cin, _ = weight.shape
    filt = jnp.broadcast_to(weight[:, :, 1][:, :, None, None], (Cout, Cin, 3, 3))
    filt = filt.at[:, :, 1, 1].set(weight[:, :, 0])
    out = lax.conv_general_dilated(
        x_nchw, filt, window_strides=(1, 1), padding=((1, 1), (1, 1)),
        dimension_numbers=("NCHW", "OIHW", "NCHW"))
    return out + bias[None, :, None, None]


if __name__ == "__main__":
    key = jax.random.PRNGKey(0)
    kx, kw = jax.random.split(key)

    N, Cin, Cout, H, W = 2, 4, 8, 16, 16

    x = jax.random.normal(kx, (N, Cin, H, W), dtype=jnp.float32)
    # weight ~ N(0, 1/sqrt(Cout*Cin)), shape (Cout, Cin, 2); bias zeros
    weight = jax.random.normal(kw, (Cout, Cin, 2), dtype=jnp.float32) \
        * (1.0 / (Cout * Cin) ** 0.5)
    bias = jnp.zeros((Cout,), dtype=jnp.float32)

    out = isotropic_conv2d(x, weight, bias)
    out = jax.block_until_ready(out)

    ref = jax.block_until_ready(_reference_conv(x, weight, bias))
    assert out.shape == (N, Cout, H, W)
    assert jnp.allclose(out, ref, atol=1e-4, rtol=1e-4)

    print("KERNEL_OK")
</pallas_src>

<mosaic_0001>
module attributes {stable_mosaic.version = 11 : i64} {
  func.func @_iso_conv_kernel(%arg0: i32, %arg1: memref<1x4x18x18xf32, #tpu.memory_space<vmem>>, %arg2: memref<8x8xf32, #tpu.memory_space<vmem>>, %arg3: memref<8x1xf32, #tpu.memory_space<vmem>>, %arg4: memref<1x8x256xf32, #tpu.memory_space<vmem>>) attributes {dimension_semantics = [#tpu.dimension_semantics<parallel>], iteration_bounds = array<i64: 2>, scalar_prefetch = 0 : i64, scratch_operands = 0 : i64, tpu.core_type = #tpu.core_type<tc>, window_params = [{transform_indices = @transform_0, window_bounds = array<i64: 1, 4, 18, 18>}, {pipeline_mode = #tpu.pipeline_mode<synchronous>, transform_indices = @transform_1, window_bounds = array<i64: 8, 8>}, {pipeline_mode = #tpu.pipeline_mode<synchronous>, transform_indices = @transform_2, window_bounds = array<i64: 8, 1>}, {transform_indices = @transform_3, window_bounds = array<i64: 1, 8, 256>}]} {
    %c0 = arith.constant 0 : index
    %c0_0 = arith.constant 0 : index
    %c0_1 = arith.constant 0 : index
    %c0_2 = arith.constant 0 : index
    %0 = vector.load %arg1[%c0, %c0_0, %c0_1, %c0_2] : memref<1x4x18x18xf32, #tpu.memory_space<vmem>>, vector<1x4x18x18xf32>
    %1 = vector.shape_cast %0 : vector<1x4x18x18xf32> to vector<4x18x18xf32>
    %2 = vector.extract_strided_slice %1 {offsets = [0, 0, 0], sizes = [4, 18, 16], strides = [1, 1, 1]} : vector<4x18x18xf32> to vector<4x18x16xf32>
    %3 = vector.extract_strided_slice %1 {offsets = [0, 0, 1], sizes = [4, 18, 16], strides = [1, 1, 1]} : vector<4x18x18xf32> to vector<4x18x16xf32>
    %4 = arith.addf %2, %3 : vector<4x18x16xf32>
    %5 = vector.extract_strided_slice %1 {offsets = [0, 0, 2], sizes = [4, 18, 16], strides = [1, 1, 1]} : vector<4x18x18xf32> to vector<4x18x16xf32>
    %6 = arith.addf %4, %5 : vector<4x18x16xf32>
    %7 = vector.extract_strided_slice %6 {offsets = [0, 0, 0], sizes = [4, 16, 16], strides = [1, 1, 1]} : vector<4x18x16xf32> to vector<4x16x16xf32>
    %8 = vector.extract_strided_slice %6 {offsets = [0, 1, 0], sizes = [4, 16, 16], strides = [1, 1, 1]} : vector<4x18x16xf32> to vector<4x16x16xf32>
    %9 = arith.addf %7, %8 : vector<4x16x16xf32>
    %10 = vector.extract_strided_slice %6 {offsets = [0, 2, 0], sizes = [4, 16, 16], strides = [1, 1, 1]} : vector<4x18x16xf32> to vector<4x16x16xf32>
    %11 = arith.addf %9, %10 : vector<4x16x16xf32>
    %12 = vector.extract_strided_slice %1 {offsets = [0, 1, 1], sizes = [4, 16, 16], strides = [1, 1, 1]} : vector<4x18x18xf32> to vector<4x16x16xf32>
    %13 = tpu.concatenate %12, %11 in 0 : vector<4x16x16xf32>, vector<4x16x16xf32> -> vector<8x16x16xf32>
    %14 = vector.shape_cast %13 : vector<8x16x16xf32> to vector<8x256xf32>
    %c0_3 = arith.constant 0 : index
    %c0_4 = arith.constant 0 : index
    %15 = vector.load %arg2[%c0_3, %c0_4] : memref<8x8xf32, #tpu.memory_space<vmem>>, vector<8x8xf32>
    %cst = arith.constant dense<0.000000e+00> : vector<8x256xf32>
    %16 = tpu.matmul %15, %14, %cst {dimension_numbers = #tpu.dot_dimension_numbers<[1], [0], [0], [1], [0, 0, 1, 1], [], []>} : vector<8x8xf32>, vector<8x256xf32>, vector<8x256xf32> -> vector<8x256xf32>
    %c0_5 = arith.constant 0 : index
    %c0_6 = arith.constant 0 : index
    %17 = vector.load %arg3[%c0_5, %c0_6] : memref<8x1xf32, #tpu.memory_space<vmem>>, vector<8x1xf32>
    %18 = vector.broadcast %17 : vector<8x1xf32> to vector<8x256xf32>
    %19 = arith.addf %16, %18 : vector<8x256xf32>
    %c0_7 = arith.constant 0 : index
    %c0_8 = arith.constant 0 : index
    %c0_9 = arith.constant 0 : index
    %20 = vector.load %arg4[%c0_7, %c0_8, %c0_9] : memref<1x8x256xf32, #tpu.memory_space<vmem>>, vector<1x8x256xf32>
    %21 = vector.shape_cast %20 : vector<1x8x256xf32> to vector<8x256xf32>
    %22 = vector.shape_cast %19 : vector<8x256xf32> to vector<1x8x256xf32>
    tpu.vector_store %arg4[%c0_7, %c0_8, %c0_9], %22 {strides = array<i32>} : memref<1x8x256xf32, #tpu.memory_space<vmem>>, vector<1x8x256xf32>,
    return
  }
  func.func @transform_0(%arg0: i32) -> (i32, i32, i32, i32) {
    %c0_i32 = arith.constant 0 : i32
    %c0_i32_0 = arith.constant 0 : i32
    %c0_i32_1 = arith.constant 0 : i32
    %c0_i32_2 = arith.constant 0 : i32
    return %arg0, %c0_i32, %c0_i32_0, %c0_i32_1 : i32, i32, i32, i32
  }
  func.func @transform_1(%arg0: i32) -> (i32, i32) {
    %c0_i32 = arith.constant 0 : i32
    %c0_i32_0 = arith.constant 0 : i32
    %c0_i32_1 = arith.constant 0 : i32
    return %c0_i32, %c0_i32_0 : i32, i32
  }
  func.func @transform_2(%arg0: i32) -> (i32, i32) {
    %c0_i32 = arith.constant 0 : i32
    %c0_i32_0 = arith.constant 0 : i32
    %c0_i32_1 = arith.constant 0 : i32
    return %c0_i32, %c0_i32_0 : i32, i32
  }
  func.func @transform_3(%arg0: i32) -> (i32, i32, i32) {
    %c0_i32 = arith.constant 0 : i32
    %c0_i32_0 = arith.constant 0 : i32
    %c0_i32_1 = arith.constant 0 : i32
    return %arg0, %c0_i32, %c0_i32_0 : i32, i32, i32
  }
}

</mosaic_0001>

<llo_original>
// kernel: tpu_custom_call.1
$region0: #{tpu_custom_call.1}
  #allocation0 [shape = 'u32[]', space=smem, size = 0x4, offset = 0x4, fixed_abs, tag = 'smem constant byte address 0x4 - core index']
  #allocation1 [shape = 'u32[144,128]{1,0:T(1,128)}', space=vmem, size = 0x12000, scoped, tag = 'internal scratch']
  %s0 = inlined_call_operand.hbm [shape: f32[2,4,18,18], index: 0, kind: input, shape index: {}]
  %s1 = inlined_call_operand.hbm [shape: f32[8,8], index: 1, kind: input, shape index: {}]
  %s2 = inlined_call_operand.hbm [shape: f32[8,1], index: 2, kind: input, shape index: {}]
  %s3 = inlined_call_operand.hbm [shape: f32[2,8,256], index: 3, kind: output, shape index: {}]
  %s4 = sld [smem:[#allocation0]]
  $region57: #{tpu_custom_call.1} parent=0
    _
  %s6 = ssub.s32 1, %s4
  %s7 = scalar_select 0, %s6, %s4
  $region1: #{tpu_custom_call.1} parent=0
    #allocation2 [shape = 'u8[98304]{0}', space=vmem, size = 0x18000, scoped, tag = 'input window, operand 0']
    #allocation3 [shape = 's32[2]{0}', space=sflag, size = 0x8, scoped, tag = 'scoped memory for tpu_custom_call.1']
    #allocation4 [shape = 's32[2]{0}', space=sflag, size = 0x8, scoped, tag = 'scoped memory for tpu_custom_call.1']
    #allocation5 [shape = 'u8[4096]{0}', space=vmem, size = 0x1000, scoped, tag = 'input window, operand 1, single buffered']
    #allocation6 [shape = 's32[1]{0}', space=sflag, size = 0x4, scoped, tag = 'scoped memory for tpu_custom_call.1']
    #allocation7 [shape = 'u8[4096]{0}', space=vmem, size = 0x1000, scoped, tag = 'input window, operand 2, single buffered']
    #allocation8 [shape = 'u8[16384]{0}', space=vmem, size = 0x4000, scoped, tag = 'output window, operand 0']
    %8 = vsyncpa [#allocation3], 0
    %s9 = scalar_lea.sflag [#allocation3], 1
    %10 = vsyncpa %s9, 0
    %11 = vsyncpa [#allocation6], 0
    %12 = vsyncpa [#allocation4], 0
    %s13 = scalar_lea.sflag [#allocation4], 1
    %14 = vsyncpa %s13, 0
    loop: start=0, step=1, limit=4
    $region2: #{tpu_custom_call.1} parent=1 // loop_pre_header
      _
    $region3: #{tpu_custom_call.1} parent=1 // loop_header
      %s16 = sphi 0, %s20
      %p17 = scmp.ge.s32.totalorder %s16, 4
      %s26 = sphi 0, %s28
      %s29 = sphi 0, %s26
      %s30 = sphi 0, %s29
      %s46 = sphi 0, %s30
      %s50 = sphi 0, %s50
      %s52 = sphi 0, %s50
      %s53 = sphi 0, %s52
      %s67 = sphi 0, %s53
      %s71 = sphi 0, %s71
      %s73 = sphi 0, %s71
      %s74 = sphi 0, %s73
      %s88 = sphi 0, %s74
      %s94 = sphi 0, %s96
      %s97 = sphi 0, %s94
      %s98 = sphi 0, %s97
      %s114 = sphi 0, %s98
    $region4: #{tpu_custom_call.1} parent=1 // loop_header_branch
      %19 = sbr.rel (%p17) target = $region8
    $region5: #{tpu_custom_call.1} parent=1 // loop_body
      %s21 = ssub.s32 %s16, 1
      %s22 = ssub.s32 %s16, 2
      %s23 = sadd.s32 %s16, 1
      %s24 = ssub.s32 %s16, %s23
      %p25 = scmp.eq.s32.totalorder %s24, 0
      %s27 = sadd.s32 %s26, 1
      %s28 = scalar_select %p25, %s26, %s27
      %p31 = pneg %p25
      %p32 = scmp.eq.s32.totalorder %s16, 1
      %p33 = por %p31, %p32
      %p34 = scmp.ne.s32.totalorder %s26, %s29
      %p35 = scmp.eq.s32.totalorder %s16, 0
      %p36 = por %p34, %p35
      %p37 = scmp.ne.s32.totalorder %s26, %s29
      %p38 = scmp.eq.s32.totalorder %s21, 1
      %p39 = por %p37, %p38
      %p40 = scmp.ne.s32.totalorder %s29, %s30
      %p41 = scmp.eq.s32.totalorder %s21, 0
      %p42 = por %p40, %p41
      %p43 = scmp.ne.s32.totalorder %s29, %s30
      %p44 = scmp.eq.s32.totalorder %s22, 1
      %p45 = por %p43, %p44
      %p47 = scmp.ne.s32.totalorder %s30, %s46
      %p48 = scmp.eq.s32.totalorder %s22, 0
      %p49 = por %p47, %p48
      %s51 = sadd.s32 %s50, 1
      %p54 = scmp.eq.s32.totalorder %s16, 1
      %p55 = scmp.ne.s32.totalorder %s50, %s52
      %p56 = scmp.eq.s32.totalorder %s16, 0
      %p57 = por %p55, %p56
      %p58 = scmp.ne.s32.totalorder %s50, %s52
      %p59 = scmp.eq.s32.totalorder %s21, 1
      %p60 = por %p58, %p59
      %p61 = scmp.ne.s32.totalorder %s52, %s53
      %p62 = scmp.eq.s32.totalorder %s21, 0
      %p63 = por %p61, %p62
      %p64 = scmp.ne.s32.totalorder %s52, %s53
      %p65 = scmp.eq.s32.totalorder %s22, 1
      %p66 = por %p64, %p65
      %p68 = scmp.ne.s32.totalorder %s53, %s67
      %p69 = scmp.eq.s32.totalorder %s22, 0
      %p70 = por %p68, %p69
      %s72 = sadd.s32 %s71, 1
      %p75 = scmp.eq.s32.totalorder %s16, 1
      %p76 = scmp.ne.s32.totalorder %s71, %s73
      %p77 = scmp.eq.s32.totalorder %s16, 0
      %p78 = por %p76, %p77
      %p79 = scmp.ne.s32.totalorder %s71, %s73
      %p80 = scmp.eq.s32.totalorder %s21, 1
      %p81 = por %p79, %p80
      %p82 = scmp.ne.s32.totalorder %s73, %s74
      %p83 = scmp.eq.s32.totalorder %s21, 0
      %p84 = por %p82, %p83
      %p85 = scmp.ne.s32.totalorder %s73, %s74
      %p86 = scmp.eq.s32.totalorder %s22, 1
      %p87 = por %p85, %p86
      %p89 = scmp.ne.s32.totalorder %s74, %s88
      %p90 = scmp.eq.s32.totalorder %s22, 0
      %p91 = por %p89, %p90
      %s92 = ssub.s32 %s16, %s23
      %p93 = scmp.eq.s32.totalorder %s92, 0
      %s95 = sadd.s32 %s94, 1
      %s96 = scalar_select %p93, %s94, %s95
      %p99 = pneg %p93
      %p100 = scmp.eq.s32.totalorder %s16, 1
      %p101 = por %p99, %p100
      %p102 = scmp.ne.s32.totalorder %s94, %s97
      %p103 = scmp.eq.s32.totalorder %s16, 0
      %p104 = por %p102, %p103
      %p105 = scmp.ne.s32.totalorder %s94, %s97
      %p106 = scmp.eq.s32.totalorder %s21, 1
      %p107 = por %p105, %p106
      %p108 = scmp.ne.s32.totalorder %s97, %s98
      %p109 = scmp.eq.s32.totalorder %s21, 0
      %p110 = por %p108, %p109
      %p111 = scmp.ne.s32.totalorder %s97, %s98
      %p112 = scmp.eq.s32.totalorder %s22, 1
      %p113 = por %p111, %p112
      %p115 = scmp.ne.s32.totalorder %s98, %s114
      %p116 = scmp.eq.s32.totalorder %s22, 0
      %p117 = por %p115, %p116
      %p118 = scmp.le.s32.totalorder 1, %s16
      %p119 = scmp.lt.s32.totalorder %s16, 3
      %p120 = pnand %p118, %p119
      %p121 = pneg %p120
      // Predicated region
      $region9: #{tpu_custom_call.1} parent=5 // pred_check
        _
      $region10: #{tpu_custom_call.1} parent=5 // pred_check_branch
        %123 = sbr.rel (%p120) target = $region12
      $region11: #{tpu_custom_call.1} parent=5 // pred_region
        %s124 = ssub.s32 %s16, 1
        // Predicated region
        $region13: #{tpu_custom_call.1} parent=11 // pred_check
          %p125 = pneg %p63
        $region14: #{tpu_custom_call.1} parent=11 // pred_check_branch
          %127 = sbr.rel (%p125) target = $region16
        $region15: #{tpu_custom_call.1} parent=11 // pred_region
          %s129 = ssub.s32 128, 128
          %130 = vsyncadd [#allocation6], %s129
          %s132 = sshll.u32 [#allocation5], 4
          %s133 = int_to_ptr.vmem [resolvable:$true] %s132
          %135 = dma.hbm_to_vmem [thread:$0]  %s1, 128, %s133, [#allocation6]
        $region16: #{tpu_custom_call.1} parent=11 // pred_fallthru
          _
        // Predicated region
        $region17: #{tpu_custom_call.1} parent=11 // pred_check
          %p136 = pneg %p84
        $region18: #{tpu_custom_call.1} parent=11 // pred_check_branch
          %138 = sbr.rel (%p136) target = $region20
        $region19: #{tpu_custom_call.1} parent=11 // pred_region
          %s140 = ssub.s32 128, 128
          %141 = vsyncadd [#allocation6], %s140
          %s143 = sshll.u32 [#allocation7], 4
          %s144 = int_to_ptr.vmem [resolvable:$true] %s143
          %146 = dma.hbm_to_vmem [thread:$0]  %s2, 128, %s144, [#allocation6]
        $region20: #{tpu_custom_call.1} parent=11 // pred_fallthru
          _
      $region12: #{tpu_custom_call.1} parent=5 // pred_fallthru
        _
      %p147 = scmp.lt.s32.totalorder %s16, 2
      // Predicated region
      $region21: #{tpu_custom_call.1} parent=5 // pred_check
        %p148 = pneg %p147
      $region22: #{tpu_custom_call.1} parent=5 // pred_check_branch
        %150 = sbr.rel (%p148) target = $region24
      $region23: #{tpu_custom_call.1} parent=5 // pred_region
        // Predicated region
        $region25: #{tpu_custom_call.1} parent=23 // pred_check
          %p151 = pneg %p36
        $region26: #{tpu_custom_call.1} parent=23 // pred_check_branch
          %153 = sbr.rel (%p151) target = $region28
        $region27: #{tpu_custom_call.1} parent=23 // pred_region
          %s154 = sand.u32 %s26, 1
          %s155 = scalar_lea.sflag [#allocation3], %s154
          %s156 = sand.u32 %s26, 1
          %s157 = smul.addr %s156, 96
          %s158 = scalar_lea.vmem [#allocation2], %s157
          %s160 = ssub.s32 1536, 1536
          %161 = vsyncadd %s155, %s160
          %s162 = smul.addr %s16, 12
          %s163 = smul.addr %s162, 128
          %s164 = scalar_lea.hbm %s0, %s163
          %s165 = sshll.u32 %s158, 4
          %s166 = int_to_ptr.vmem [resolvable:$true] %s165
          %171 = dma.hbm_to_vmem [thread:$0]  %s164, 1536, %s166, %s155, 128, 128, 8
        $region28: #{tpu_custom_call.1} parent=23 // pred_fallthru
          _
      $region24: #{tpu_custom_call.1} parent=5 // pred_fallthru
        _
      %p172 = scmp.le.s32.totalorder 1, %s16
      %p173 = scmp.lt.s32.totalorder %s16, 3
      %p174 = pnand %p172, %p173
      %p175 = pneg %p174
      // Predicated region
      $region29: #{tpu_custom_call.1} parent=5 // pred_check
        _
      $region30: #{tpu_custom_call.1} parent=5 // pred_check_branch
        %177 = sbr.rel (%p174) target = $region32
      $region31: #{tpu_custom_call.1} parent=5 // pred_region
        %s178 = ssub.s32 %s16, 1
        %s179 = sand.u32 %s29, 1
        %s180 = scalar_lea.sflag [#allocation3], %s179
        %s181 = sand.u32 %s29, 1
        %s182 = smul.addr %s181, 96
        %s183 = scalar_lea.vmem [#allocation2], %s182
        // Predicated region
        $region33: #{tpu_custom_call.1} parent=31 // pred_check
          %p184 = pneg %p42
        $region34: #{tpu_custom_call.1} parent=31 // pred_check_branch
          %186 = sbr.rel (%p184) target = $region36
        $region35: #{tpu_custom_call.1} parent=31 // pred_region
          %187 = dma.done %s180, 1536
        $region36: #{tpu_custom_call.1} parent=31 // pred_fallthru
          _
        // Predicated region
        $region37: #{tpu_custom_call.1} parent=31 // pred_check
          %p188 = pneg %p63
        $region38: #{tpu_custom_call.1} parent=31 // pred_check_branch
          %190 = sbr.rel (%p188) target = $region40
        $region39: #{tpu_custom_call.1} parent=31 // pred_region
          %191 = dma.done [#allocation6], 128
        $region40: #{tpu_custom_call.1} parent=31 // pred_fallthru
          _
        // Predicated region
        $region41: #{tpu_custom_call.1} parent=31 // pred_check
          %p192 = pneg %p84
        $region42: #{tpu_custom_call.1} parent=31 // pred_check_branch
          %194 = sbr.rel (%p192) target = $region44
        $region43: #{tpu_custom_call.1} parent=31 // pred_region
          %195 = dma.done [#allocation6], 128
        $region44: #{tpu_custom_call.1} parent=31 // pred_fallthru
          _
        %s196 = sand.u32 %s29, 1
        %s197 = scalar_lea.sflag [#allocation3], %s196
        %s198 = sand.u32 %s29, 1
        %s199 = smul.addr %s198, 96
        %s200 = scalar_lea.vmem [#allocation2], %s199
        %p201 = pneg %p42
        %p202 = pneg %p39
        %p203 = pneg %p63
        %p204 = pneg %p60
        %p205 = pneg %p84
        %p206 = pneg %p81
        %p207 = pneg %p110
        %p208 = pneg %p107
        %s209 = sand.u32 %s97, 1
        %s210 = scalar_lea.sflag [#allocation4], %s209
        %s211 = sand.u32 %s97, 1
        %s212 = smul.addr %s211, 16
        %s213 = scalar_lea.vmem [#allocation8], %s212
        %v214 = vld [vmem:[%s183] sm:$0xff]
        %v215 = vld [vmem:[%s183 + $0x8] sm:$0xff]
        %v216 = vld [vmem:[%s183 + $0x10] sm:$0x3]
        %v217 = vld [vmem:[%s183 + $0x18] sm:$0xff]
        %v218 = vld [vmem:[%s183 + $0x20] sm:$0xff]
        %v219 = vld [vmem:[%s183 + $0x28] sm:$0x3]
        %v220 = vld [vmem:[%s183 + $0x30] sm:$0xff]
        %v221 = vld [vmem:[%s183 + $0x38] sm:$0xff]
        %v222 = vld [vmem:[%s183 + $0x40] sm:$0x3]
        %v223 = vld [vmem:[%s183 + $0x48] sm:$0xff]
        %v224 = vld [vmem:[%s183 + $0x50] sm:$0xff]
        %v225 = vld [vmem:[%s183 + $0x58] sm:$0x3]
        %238 = vrot.lane.b32.xlu0 %v214, 127
        %v239 = vpop.permute.xlu0 %238
        %240 = vrot.lane.b32.xlu0 %v215, 127
        %v241 = vpop.permute.xlu0 %240
        %242 = vrot.lane.b32.xlu0 %v216, 127
        %v243 = vpop.permute.xlu0 %242
        %244 = vrot.lane.b32.xlu0 %v217, 127
        %v245 = vpop.permute.xlu0 %244
        %246 = vrot.lane.b32.xlu0 %v218, 127
        %v247 = vpop.permute.xlu0 %246
        %248 = vrot.lane.b32.xlu0 %v219, 127
        %v249 = vpop.permute.xlu0 %248
        %250 = vrot.lane.b32.xlu0 %v220, 127
        %v251 = vpop.permute.xlu0 %250
        %252 = vrot.lane.b32.xlu0 %v221, 127
        %v253 = vpop.permute.xlu0 %252
        %254 = vrot.lane.b32.xlu0 %v222, 127
        %v255 = vpop.permute.xlu0 %254
        %256 = vrot.lane.b32.xlu0 %v223, 127
        %v257 = vpop.permute.xlu0 %256
        %258 = vrot.lane.b32.xlu0 %v224, 127
        %v259 = vpop.permute.xlu0 %258
        %260 = vrot.lane.b32.xlu0 %v225, 127
        %v261 = vpop.permute.xlu0 %260
        %v274 = vadd.f32 %v214, %v239
        %v275 = vadd.f32 %v215, %v241
        %v276 = vadd.f32 %v216, %v243
        %v277 = vadd.f32 %v217, %v245
        %v278 = vadd.f32 %v218, %v247
        %v279 = vadd.f32 %v219, %v249
        %v280 = vadd.f32 %v220, %v251
        %v281 = vadd.f32 %v221, %v253
        %v282 = vadd.f32 %v222, %v255
        %v283 = vadd.f32 %v223, %v257
        %v284 = vadd.f32 %v224, %v259
        %v285 = vadd.f32 %v225, %v261
        %286 = vrot.lane.b32.xlu0 %v214, 126
        %v287 = vpop.permute.xlu0 %286
        %288 = vrot.lane.b32.xlu0 %v215, 126
        %v289 = vpop.permute.xlu0 %288
        %290 = vrot.lane.b32.xlu0 %v216, 126
        %v291 = vpop.permute.xlu0 %290
        %292 = vrot.lane.b32.xlu0 %v217, 126
        %v293 = vpop.permute.xlu0 %292
        %294 = vrot.lane.b32.xlu0 %v218, 126
        %v295 = vpop.permute.xlu0 %294
        %296 = vrot.lane.b32.xlu0 %v219, 126
        %v297 = vpop.permute.xlu0 %296
        %298 = vrot.lane.b32.xlu0 %v220, 126
        %v299 = vpop.permute.xlu0 %298
        %300 = vrot.lane.b32.xlu0 %v221, 126
        %v301 = vpop.permute.xlu0 %300
        %302 = vrot.lane.b32.xlu0 %v222, 126
        %v303 = vpop.permute.xlu0 %302
        %304 = vrot.lane.b32.xlu0 %v223, 126
        %v305 = vpop.permute.xlu0 %304
        %306 = vrot.lane.b32.xlu0 %v224, 126
        %v307 = vpop.permute.xlu0 %306
        %308 = vrot.lane.b32.xlu0 %v225, 126
        %v309 = vpop.permute.xlu0 %308
        %v322 = vadd.f32 %v274, %v287
        %v323 = vadd.f32 %v275, %v289
        %v324 = vadd.f32 %v276, %v291
        %v325 = vadd.f32 %v277, %v293
        %v326 = vadd.f32 %v278, %v295
        %v327 = vadd.f32 %v279, %v297
        %v328 = vadd.f32 %v280, %v299
        %v329 = vadd.f32 %v281, %v301
        %v330 = vadd.f32 %v282, %v303
        %v331 = vadd.f32 %v283, %v305
        %v332 = vadd.f32 %v284, %v307
        %v333 = vadd.f32 %v285, %v309
        %vm346 = vcmask 1046528
        %v347 = vrot.slane %v322, 1
        %v348 = vrot.slane %v323, 1
        %v349 = vsel %vm346, %v347, %v348
        %v350 = vrot.slane %v324, 1
        %v351 = vsel %vm346, %v348, %v350
        %v352 = vrot.slane %v325, 1
        %v353 = vrot.slane %v326, 1
        %v354 = vsel %vm346, %v352, %v353
        %v355 = vrot.slane %v327, 1
        %v356 = vsel %vm346, %v353, %v355
        %v357 = vrot.slane %v328, 1
        %v358 = vrot.slane %v329, 1
        %v359 = vsel %vm346, %v357, %v358
        %v360 = vrot.slane %v330, 1
        %v361 = vsel %vm346, %v358, %v360
        %v362 = vrot.slane %v331, 1
        %v363 = vrot.slane %v332, 1
        %v364 = vsel %vm346, %v362, %v363
        %v365 = vrot.slane %v333, 1
        %v366 = vsel %vm346, %v363, %v365
        %v375 = vadd.f32 %v322, %v349
        %v376 = vadd.f32 %v323, %v351
        %v377 = vadd.f32 %v325, %v354
        %v378 = vadd.f32 %v326, %v356
        %v379 = vadd.f32 %v328, %v359
        %v380 = vadd.f32 %v329, %v361
        %v381 = vadd.f32 %v331, %v364
        %v382 = vadd.f32 %v332, %v366
        %vm383 = vcmask 1045504
        %v384 = vrot.slane %v322, 2
        %v385 = vrot.slane %v323, 2
        %v386 = vsel %vm383, %v384, %v385
        %v387 = vrot.slane %v324, 2
        %v388 = vsel %vm383, %v385, %v387
        %v389 = vrot.slane %v325, 2
        %v390 = vrot.slane %v326, 2
        %v391 = vsel %vm383, %v389, %v390
        %v392 = vrot.slane %v327, 2
        %v393 = vsel %vm383, %v390, %v392
        %v394 = vrot.slane %v328, 2
        %v395 = vrot.slane %v329, 2
        %v396 = vsel %vm383, %v394, %v395
        %v397 = vrot.slane %v330, 2
        %v398 = vsel %vm383, %v395, %v397
        %v399 = vrot.slane %v331, 2
        %v400 = vrot.slane %v332, 2
        %v401 = vsel %vm383, %v399, %v400
        %v402 = vrot.slane %v333, 2
        %v403 = vsel %vm383, %v400, %v402
        %v412 = vadd.f32 %v375, %v386
        %v413 = vadd.f32 %v376, %v388
        %v414 = vadd.f32 %v377, %v391
        %v415 = vadd.f32 %v378, %v393
        %v416 = vadd.f32 %v379, %v396
        %v417 = vadd.f32 %v380, %v398
        %v418 = vadd.f32 %v381, %v401
        %v419 = vadd.f32 %v382, %v403
        %vm428 = vcmask 1040384
        %v429 = vrot.slane %v412, 7
        %v430 = vrot.slane %v413, 7
        %v431 = vsel %vm428, %v429, %v430
        %v432 = vrot.slane %v414, 7
        %v433 = vrot.slane %v415, 7
        %v434 = vsel %vm428, %v432, %v433
        %v435 = vrot.slane %v416, 7
        %v436 = vrot.slane %v417, 7
        %v437 = vsel %vm428, %v435, %v436
        %v438 = vrot.slane %v418, 7
        %v439 = vrot.slane %v419, 7
        %v440 = vsel %vm428, %v438, %v439
        %441 = vrot.lane.b32.xlu0 %v429, 1
        %v442 = vpop.permute.xlu0 %441
        %443 = vrot.lane.b32.xlu0 %v431, 1
        %v444 = vpop.permute.xlu0 %443
        %445 = vrot.lane.b32.xlu0 %v430, 1
        %v446 = vpop.permute.xlu0 %445
        %447 = vrot.lane.b32.xlu0 %v432, 1
        %v448 = vpop.permute.xlu0 %447
        %449 = vrot.lane.b32.xlu0 %v434, 1
        %v450 = vpop.permute.xlu0 %449
        %451 = vrot.lane.b32.xlu0 %v433, 1
        %v452 = vpop.permute.xlu0 %451
        %453 = vrot.lane.b32.xlu0 %v435, 1
        %v454 = vpop.permute.xlu0 %453
        %455 = vrot.lane.b32.xlu0 %v437, 1
        %v456 = vpop.permute.xlu0 %455
        %457 = vrot.lane.b32.xlu0 %v436, 1
        %v458 = vpop.permute.xlu0 %457
        %459 = vrot.lane.b32.xlu0 %v438, 1
        %v460 = vpop.permute.xlu0 %459
        %461 = vrot.lane.b32.xlu0 %v440, 1
        %v462 = vpop.permute.xlu0 %461
        %463 = vrot.lane.b32.xlu0 %v439, 1
        %v464 = vpop.permute.xlu0 %463
        %v465 = vrot.slane %v214, 1
        %v466 = vrot.slane %v215, 1
        %v467 = vsel %vm346, %v465, %v466
        %v468 = vrot.slane %v216, 1
        %v469 = vsel %vm346, %v466, %v468
        %v470 = vrot.slane %v217, 1
        %v471 = vrot.slane %v218, 1
        %v472 = vsel %vm346, %v470, %v471
        %v473 = vrot.slane %v219, 1
        %v474 = vsel %vm346, %v471, %v473
        %v475 = vrot.slane %v220, 1
        %v476 = vrot.slane %v221, 1
        %v477 = vsel %vm346, %v475, %v476
        %v478 = vrot.slane %v222, 1
        %v479 = vsel %vm346, %v476, %v478
        %v480 = vrot.slane %v223, 1
        %v481 = vrot.slane %v224, 1
        %v482 = vsel %vm346, %v480, %v481
        %v483 = vrot.slane %v225, 1
        %v484 = vsel %vm346, %v481, %v483
        %v485 = vrot.slane %v442, 1
        %v486 = vrot.slane %v444, 1
        %v487 = vsel %vm346, %v485, %v486
        %v488 = vrot.slane %v446, 1
        %v489 = vsel %vm346, %v486, %v488
        %v490 = vrot.slane %v448, 1
        %v491 = vrot.slane %v450, 1
        %v492 = vsel %vm346, %v490, %v491
        %v493 = vrot.slane %v452, 1
        %v494 = vsel %vm346, %v491, %v493
        %v495 = vrot.slane %v454, 1
        %v496 = vrot.slane %v456, 1
        %v497 = vsel %vm346, %v495, %v496
        %v498 = vrot.slane %v458, 1
        %v499 = vsel %vm346, %v496, %v498
        %v500 = vrot.slane %v460, 1
        %v501 = vrot.slane %v462, 1
        %v502 = vsel %vm346, %v500, %v501
        %v503 = vrot.slane %v464, 1
        %v504 = vsel %vm346, %v501, %v503
        %505 = vrot.lane.b32.xlu0 %v467, 127
        %v506 = vpop.permute.xlu0 %505
        %507 = vrot.lane.b32.xlu0 %v469, 127
        %v508 = vpop.permute.xlu0 %507
        %509 = vrot.lane.b32.xlu0 %v472, 127
        %v510 = vpop.permute.xlu0 %509
        %511 = vrot.lane.b32.xlu0 %v474, 127
        %v512 = vpop.permute.xlu0 %511
        %513 = vrot.lane.b32.xlu0 %v477, 127
        %v514 = vpop.permute.xlu0 %513
        %515 = vrot.lane.b32.xlu0 %v479, 127
        %v516 = vpop.permute.xlu0 %515
        %517 = vrot.lane.b32.xlu0 %v482, 127
        %v518 = vpop.permute.xlu0 %517
        %519 = vrot.lane.b32.xlu0 %v484, 127
        %v520 = vpop.permute.xlu0 %519
        %521 = vrot.lane.b32.xlu0 %v487, 127
        %v522 = vpop.permute.xlu0 %521
        %523 = vrot.lane.b32.xlu0 %v489, 127
        %v524 = vpop.permute.xlu0 %523
        %525 = vrot.lane.b32.xlu0 %v492, 127
        %v526 = vpop.permute.xlu0 %525
        %527 = vrot.lane.b32.xlu0 %v494, 127
        %v528 = vpop.permute.xlu0 %527
        %529 = vrot.lane.b32.xlu0 %v497, 127
        %v530 = vpop.permute.xlu0 %529
        %531 = vrot.lane.b32.xlu0 %v499, 127
        %v532 = vpop.permute.xlu0 %531
        %533 = vrot.lane.b32.xlu0 %v502, 127
        %v534 = vpop.permute.xlu0 %533
        %535 = vrot.lane.b32.xlu0 %v504, 127
        %v536 = vpop.permute.xlu0 %535
        %v553 = vcombine.low %v506, %v514
        %v554 = vcombine.high %v506, %v514
        %v556 = vunpack.c.l.s4 1983009808
        %v557 = vunpack.c.0.s8 %v556
        %v558 = vlaneseq
        %v559 = vshrl.u32 %v558, 7
        %v560 = vsub.s32 %v557, %v559
        %v561 = vrot.slane %v553, %v560
        %v563 = vunpack.c.l.s4 1983009808
        %v564 = vunpack.c.0.s8 %v563
        %v565 = vlaneseq
        %v566 = vshrl.u32 %v565, 7
        %v567 = vsub.s32 %v564, %v566
        %v568 = vrot.slane %v554, %v567
        %v569 = vcombine.low %v510, %v518
        %v570 = vcombine.high %v510, %v518
        %v572 = vunpack.c.l.s4 1983009808
        %v573 = vunpack.c.0.s8 %v572
        %v574 = vlaneseq
        %v575 = vshrl.u32 %v574, 7
        %v576 = vsub.s32 %v573, %v575
        %v577 = vrot.slane %v569, %v576
        %v579 = vunpack.c.l.s4 1983009808
        %v580 = vunpack.c.0.s8 %v579
        %v581 = vlaneseq
        %v582 = vshrl.u32 %v581, 7
        %v583 = vsub.s32 %v580, %v582
        %v584 = vrot.slane %v570, %v583
        %v585 = vcombine.low %v522, %v530
        %v586 = vcombine.high %v522, %v530
        %v588 = vunpack.c.l.s4 1983009808
        %v589 = vunpack.c.0.s8 %v588
        %v590 = vlaneseq
        %v591 = vshrl.u32 %v590, 7
        %v592 = vsub.s32 %v589, %v591
        %v593 = vrot.slane %v585, %v592
        %v595 = vunpack.c.l.s4 1983009808
        %v596 = vunpack.c.0.s8 %v595
        %v597 = vlaneseq
        %v598 = vshrl.u32 %v597, 7
        %v599 = vsub.s32 %v596, %v598
        %v600 = vrot.slane %v586, %v599
        %v601 = vcombine.low %v526, %v534
        %v602 = vcombine.high %v526, %v534
        %v604 = vunpack.c.l.s4 1983009808
        %v605 = vunpack.c.0.s8 %v604
        %v606 = vlaneseq
        %v607 = vshrl.u32 %v606, 7
        %v608 = vsub.s32 %v605, %v607
        %v609 = vrot.slane %v601, %v608
        %v611 = vunpack.c.l.s4 1983009808
        %v612 = vunpack.c.0.s8 %v611
        %v613 = vlaneseq
        %v614 = vshrl.u32 %v613, 7
        %v615 = vsub.s32 %v612, %v614
        %v616 = vrot.slane %v602, %v615
        %v617 = vcombine.low %v561, %v577
        %v618 = vcombine.high %v561, %v577
        %v620 = vunpack.c.l.s4 1934713408
        %v621 = vunpack.c.0.s8 %v620
        %v622 = vlaneseq
        %v623 = vshrl.u32 %v622, 7
        %v624 = vsub.s32 %v621, %v623
        %v625 = vrot.slane %v617, %v624
        %v627 = vunpack.c.l.s4 1934713408
        %v628 = vunpack.c.0.s8 %v627
        %v629 = vlaneseq
        %v630 = vshrl.u32 %v629, 7
        %v631 = vsub.s32 %v628, %v630
        %v632 = vrot.slane %v618, %v631
        %v633 = vcombine.low %v568, %v584
        %v634 = vcombine.high %v568, %v584
        %v636 = vunpack.c.l.s4 1934713408
        %v637 = vunpack.c.0.s8 %v636
        %v638 = vlaneseq
        %v639 = vshrl.u32 %v638, 7
        %v640 = vsub.s32 %v637, %v639
        %v641 = vrot.slane %v633, %v640
        %v643 = vunpack.c.l.s4 1934713408
        %v644 = vunpack.c.0.s8 %v643
        %v645 = vlaneseq
        %v646 = vshrl.u32 %v645, 7
        %v647 = vsub.s32 %v644, %v646
        %v648 = vrot.slane %v634, %v647
        %v649 = vcombine.low %v593, %v609
        %v650 = vcombine.high %v593, %v609
        %v652 = vunpack.c.l.s4 1934713408
        %v653 = vunpack.c.0.s8 %v652
        %v654 = vlaneseq
        %v655 = vshrl.u32 %v654, 7
        %v656 = vsub.s32 %v653, %v655
        %v657 = vrot.slane %v649, %v656
        %v659 = vunpack.c.l.s4 1934713408
        %v660 = vunpack.c.0.s8 %v659
        %v661 = vlaneseq
        %v662 = vshrl.u32 %v661, 7
        %v663 = vsub.s32 %v660, %v662
        %v664 = vrot.slane %v650, %v663
        %v665 = vcombine.low %v600, %v616
        %v666 = vcombine.high %v600, %v616
        %v668 = vunpack.c.l.s4 1934713408
        %v669 = vunpack.c.0.s8 %v668
        %v670 = vlaneseq
        %v671 = vshrl.u32 %v670, 7
        %v672 = vsub.s32 %v669, %v671
        %v673 = vrot.slane %v665, %v672
        %v675 = vunpack.c.l.s4 1934713408
        %v676 = vunpack.c.0.s8 %v675
        %v677 = vlaneseq
        %v678 = vshrl.u32 %v677, 7
        %v679 = vsub.s32 %v676, %v678
        %v680 = vrot.slane %v666, %v679
        %v681 = vcombine.low %v625, %v657
        %v682 = vcombine.high %v625, %v657
        %v683 = vcombine.low %v632, %v664
        %v684 = vcombine.high %v632, %v664
        %v685 = vcombine.low %v641, %v673
        %v686 = vcombine.high %v641, %v673
        %v687 = vcombine.low %v648, %v680
        %v688 = vcombine.high %v648, %v680
        %v689 = vcombine.low %v508, %v516
        %v690 = vcombine.high %v508, %v516
        %v692 = vunpack.c.l.s4 1983009808
        %v693 = vunpack.c.0.s8 %v692
        %v694 = vlaneseq
        %v695 = vshrl.u32 %v694, 7
        %v696 = vsub.s32 %v693, %v695
        %v697 = vrot.slane %v689, %v696
        %v699 = vunpack.c.l.s4 1983009808
        %v700 = vunpack.c.0.s8 %v699
        %v701 = vlaneseq
        %v702 = vshrl.u32 %v701, 7
        %v703 = vsub.s32 %v700, %v702
        %v704 = vrot.slane %v690, %v703
        %v705 = vcombine.low %v512, %v520
        %v706 = vcombine.high %v512, %v520
        %v708 = vunpack.c.l.s4 1983009808
        %v709 = vunpack.c.0.s8 %v708
        %v710 = vlaneseq
        %v711 = vshrl.u32 %v710, 7
        %v712 = vsub.s32 %v709, %v711
        %v713 = vrot.slane %v705, %v712
        %v715 = vunpack.c.l.s4 1983009808
        %v716 = vunpack.c.0.s8 %v715
        %v717 = vlaneseq
        %v718 = vshrl.u32 %v717, 7
        %v719 = vsub.s32 %v716, %v718
        %v720 = vrot.slane %v706, %v719
        %v721 = vcombine.low %v524, %v532
        %v722 = vcombine.high %v524, %v532
        %v724 = vunpack.c.l.s4 1983009808
        %v725 = vunpack.c.0.s8 %v724
        %v726 = vlaneseq
        %v727 = vshrl.u32 %v726, 7
        %v728 = vsub.s32 %v725, %v727
        %v729 = vrot.slane %v721, %v728
        %v731 = vunpack.c.l.s4 1983009808
        %v732 = vunpack.c.0.s8 %v731
        %v733 = vlaneseq
        %v734 = vshrl.u32 %v733, 7
        %v735 = vsub.s32 %v732, %v734
        %v736 = vrot.slane %v722, %v735
        %v737 = vcombine.low %v528, %v536
        %v738 = vcombine.high %v528, %v536
        %v740 = vunpack.c.l.s4 1983009808
        %v741 = vunpack.c.0.s8 %v740
        %v742 = vlaneseq
        %v743 = vshrl.u32 %v742, 7
        %v744 = vsub.s32 %v741, %v743
        %v745 = vrot.slane %v737, %v744
        %v747 = vunpack.c.l.s4 1983009808
        %v748 = vunpack.c.0.s8 %v747
        %v749 = vlaneseq
        %v750 = vshrl.u32 %v749, 7
        %v751 = vsub.s32 %v748, %v750
        %v752 = vrot.slane %v738, %v751
        %v753 = vcombine.low %v697, %v713
        %v754 = vcombine.high %v697, %v713
        %v756 = vunpack.c.l.s4 1934713408
        %v757 = vunpack.c.0.s8 %v756
        %v758 = vlaneseq
        %v759 = vshrl.u32 %v758, 7
        %v760 = vsub.s32 %v757, %v759
        %v761 = vrot.slane %v753, %v760
        %v763 = vunpack.c.l.s4 1934713408
        %v764 = vunpack.c.0.s8 %v763
        %v765 = vlaneseq
        %v766 = vshrl.u32 %v765, 7
        %v767 = vsub.s32 %v764, %v766
        %v768 = vrot.slane %v754, %v767
        %v769 = vcombine.low %v704, %v720
        %v770 = vcombine.high %v704, %v720
        %v772 = vunpack.c.l.s4 1934713408
        %v773 = vunpack.c.0.s8 %v772
        %v774 = vlaneseq
        %v775 = vshrl.u32 %v774, 7
        %v776 = vsub.s32 %v773, %v775
        %v777 = vrot.slane %v769, %v776
        %v779 = vunpack.c.l.s4 1934713408
        %v780 = vunpack.c.0.s8 %v779
        %v781 = vlaneseq
        %v782 = vshrl.u32 %v781, 7
        %v783 = vsub.s32 %v780, %v782
        %v784 = vrot.slane %v770, %v783
        %v785 = vcombine.low %v729, %v745
        %v786 = vcombine.high %v729, %v745
        %v788 = vunpack.c.l.s4 1934713408
        %v789 = vunpack.c.0.s8 %v788
        %v790 = vlaneseq
        %v791 = vshrl.u32 %v790, 7
        %v792 = vsub.s32 %v789, %v791
        %v793 = vrot.slane %v785, %v792
        %v795 = vunpack.c.l.s4 1934713408
        %v796 = vunpack.c.0.s8 %v795
        %v797 = vlaneseq
        %v798 = vshrl.u32 %v797, 7
        %v799 = vsub.s32 %v796, %v798
        %v800 = vrot.slane %v786, %v799
        %v801 = vcombine.low %v736, %v752
        %v802 = vcombine.high %v736, %v752
        %v804 = vunpack.c.l.s4 1934713408
        %v805 = vunpack.c.0.s8 %v804
        %v806 = vlaneseq
        %v807 = vshrl.u32 %v806, 7
        %v808 = vsub.s32 %v805, %v807
        %v809 = vrot.slane %v801, %v808
        %v811 = vunpack.c.l.s4 1934713408
        %v812 = vunpack.c.0.s8 %v811
        %v813 = vlaneseq
        %v814 = vshrl.u32 %v813, 7
        %v815 = vsub.s32 %v812, %v814
        %v816 = vrot.slane %v802, %v815
        %v817 = vcombine.low %v761, %v793
        %v818 = vcombine.high %v761, %v793
        %v819 = vcombine.low %v768, %v800
        %v820 = vcombine.high %v768, %v800
        %v821 = vcombine.low %v777, %v809
        %v822 = vcombine.high %v777, %v809
        %v823 = vcombine.low %v784, %v816
        %v824 = vcombine.high %v784, %v816
        %826 = vrot.lane.b32.xlu0 %v682, 16
        %v827 = vpop.permute.xlu0 %826
        %830 = vrot.lane.b32.xlu0 %v683, 32
        %v831 = vpop.permute.xlu0 %830
        %834 = vrot.lane.b32.xlu0 %v684, 48
        %v835 = vpop.permute.xlu0 %834
        %838 = vrot.lane.b32.xlu0 %v685, 64
        %v839 = vpop.permute.xlu0 %838
        %842 = vrot.lane.b32.xlu0 %v686, 80
        %v843 = vpop.permute.xlu0 %842
        %846 = vrot.lane.b32.xlu0 %v687, 96
        %v847 = vpop.permute.xlu0 %846
        %850 = vrot.lane.b32.xlu0 %v688, 112
        %v851 = vpop.permute.xlu0 %850
        %854 = vrot.lane.b32.xlu0 %v818, 16
        %v855 = vpop.permute.xlu0 %854
        %858 = vrot.lane.b32.xlu0 %v819, 32
        %v859 = vpop.permute.xlu0 %858
        %862 = vrot.lane.b32.xlu0 %v820, 48
        %v863 = vpop.permute.xlu0 %862
        %866 = vrot.lane.b32.xlu0 %v821, 64
        %v867 = vpop.permute.xlu0 %866
        %870 = vrot.lane.b32.xlu0 %v822, 80
        %v871 = vpop.permute.xlu0 %870
        %874 = vrot.lane.b32.xlu0 %v823, 96
        %v875 = vpop.permute.xlu0 %874
        %878 = vrot.lane.b32.xlu0 %v824, 112
        %v879 = vpop.permute.xlu0 %878
        %vm881 = vcmask 130048
        %v882 = vsel %vm881, %v681, %v827
        %vm883 = vcmask 261120
        %v884 = vsel %vm883, %v882, %v831
        %vm885 = vcmask 392192
        %v886 = vsel %vm885, %v884, %v835
        %vm887 = vcmask 523264
        %v888 = vsel %vm887, %v886, %v839
        %vm889 = vcmask 654336
        %v890 = vsel %vm889, %v888, %v843
        %vm891 = vcmask 785408
        %v892 = vsel %vm891, %v890, %v847
        %vm893 = vcmask 916480
        %v894 = vsel %vm893, %v892, %v851
        %v895 = vsel %vm881, %v817, %v855
        %v896 = vsel %vm883, %v895, %v859
        %v897 = vsel %vm885, %v896, %v863
        %v898 = vsel %vm887, %v897, %v867
        %v899 = vsel %vm889, %v898, %v871
        %v900 = vsel %vm891, %v899, %v875
        %v901 = vsel %vm893, %v900, %v879
        %v902 = vld [vmem:[#allocation5] sm:$0xff]
        %v903 = vld [vmem:[#allocation7] sm:$0xff]
        %905 = vset.pattern.permute.xlu0 0
        %906 = vperm.xlu0 %905, %v903
        %v907 = vpop.permute.xlu0 %906
        %vm909 = vcmask 64512
        %v911 = vsel %vm909, %v902, 0
        %913 = vmatprep.subr.mxu0 %v901
        %914 = vmatpush1.msra.mxu0 %v894
        %915 = vmatprep.subr.mxu0 0.0
        %916 = vmatpush1.msra.mxu0 0.0
        %917 = vmatprep.subr.mxu0 0.0
        %918 = vmatpush1.msra.mxu0 0.0
        %919 = vmatprep.subr.mxu0 0.0
        %920 = vmatpush1.msra.mxu0 0.0
        %921 = vmatprep.subr.mxu0 0.0
        %922 = vmatpush1.msra.mxu0 0.0
        %923 = vmatprep.subr.mxu0 0.0
        %924 = vmatpush1.msra.mxu0 0.0
        %925 = vmatprep.subr.mxu0 0.0
        %926 = vmatpush1.msra.mxu0 0.0
        %927 = vmatprep.subr.mxu0 0.0
        %928 = vmatpush1.msra.mxu0 0.0
        %929 = vmatprep.subr.mxu0 0.0
        %930 = vmatpush1.msra.mxu0 0.0
        %931 = vmatprep.subr.mxu0 0.0
        %932 = vmatpush1.msra.mxu0 0.0
        %933 = vmatprep.subr.mxu0 0.0
        %934 = vmatpush1.msra.mxu0 0.0
        %935 = vmatprep.subr.mxu0 0.0
        %936 = vmatpush1.msra.mxu0 0.0
        %937 = vmatprep.subr.mxu0 0.0
        %938 = vmatpush1.msra.mxu0 0.0
        %939 = vmatprep.subr.mxu0 0.0
        %940 = vmatpush1.msra.mxu0 0.0
        %941 = vmatprep.subr.mxu0 0.0
        %942 = vmatpush1.msra.mxu0 0.0
        %943 = vmatprep.subr.mxu0 0.0
        %944 = vmatpush1.msra.mxu0 0.0
        %945 = vmatprep.subr.mxu0 0.0
        %946 = vmatpush1.msra.mxu0 0.0
        %947 = vmatprep.subr.mxu0 0.0
        %948 = vmatpush1.msra.mxu0 0.0
        %949 = vmatprep.subr.mxu0 0.0
        %950 = vmatpush1.msra.mxu0 0.0
        %951 = vmatprep.subr.mxu0 0.0
        %952 = vmatpush1.msra.mxu0 0.0
        %953 = vmatprep.subr.mxu0 0.0
        %954 = vmatpush1.msra.mxu0 0.0
        %955 = vmatprep.subr.mxu0 0.0
        %956 = vmatpush1.msra.mxu0 0.0
        %957 = vmatprep.subr.mxu0 0.0
        %958 = vmatpush1.msra.mxu0 0.0
        %959 = vmatprep.subr.mxu0 0.0
        %960 = vmatpush1.msra.mxu0 0.0
        %961 = vmatprep.subr.mxu0 0.0
        %962 = vmatpush1.msra.mxu0 0.0
        %963 = vmatprep.subr.mxu0 0.0
        %964 = vmatpush1.msra.mxu0 0.0
        %965 = vmatprep.subr.mxu0 0.0
        %966 = vmatpush1.msra.mxu0 0.0
        %967 = vmatprep.subr.mxu0 0.0
        %968 = vmatpush1.msra.mxu0 0.0
        %969 = vmatprep.subr.mxu0 0.0
        %970 = vmatpush1.msra.mxu0 0.0
        %971 = vmatprep.subr.mxu0 0.0
        %972 = vmatpush1.msra.mxu0 0.0
        %973 = vmatprep.subr.mxu0 0.0
        %974 = vmatpush1.msra.mxu0 0.0
        %975 = vmatprep.subr.mxu0 0.0
        %976 = vmatpush1.msra.mxu0 0.0
        %977 = vmatprep.mubr.f32.mxu0 0.0
        %978 = vmatmul.mubr.f32.gmra.mrb[0].mxu0 %v911
        %v979 = vpop.f32.mrb[0].mxu0
        %v980 = vadd.f32 %v907, %v979
        %v981 = vpop.f32.mrb[0].mxu0
        %v982 = vadd.f32 %v907, %v981
        %983 = vdwg.mxu0
        %984 = vst [vmem:[%s213] sm:$0xff] %v980
        %985 = vst [vmem:[%s213 + $0x8] sm:$0xff] %v982
        %s986 = sand.u32 %s97, 1
        %s987 = scalar_lea.sflag [#allocation4], %s986
        %s988 = sand.u32 %s97, 1
        %s989 = smul.addr %s988, 16
        %s990 = scalar_lea.vmem [#allocation8], %s989
        // Predicated region
        $region45: #{tpu_custom_call.1} parent=31 // pred_check
          %p991 = pneg %p107
        $region46: #{tpu_custom_call.1} parent=31 // pred_check_branch
          %993 = sbr.rel (%p991) target = $region48
        $region47: #{tpu_custom_call.1} parent=31 // pred_region
          %s995 = ssub.s32 256, 256
          %996 = vsyncadd %s987, %s995
          %s997 = smul.addr %s21, 2
          %s998 = smul.addr %s997, 128
          %s999 = scalar_lea.hbm %s3, %s998
          %s1001 = sshll.u32 %s990, 4
          %s1002 = int_to_ptr.vmem [resolvable:$true] %s1001
          %1004 = dma.vmem_to_hbm [thread:$0]  %s1002, 256, %s999, %s987
        $region48: #{tpu_custom_call.1} parent=31 // pred_fallthru
          _
      $region32: #{tpu_custom_call.1} parent=5 // pred_fallthru
        _
      %p1005 = scmp.le.s32.totalorder 2, %s16
      // Predicated region
      $region49: #{tpu_custom_call.1} parent=5 // pred_check
        %p1006 = pneg %p1005
      $region50: #{tpu_custom_call.1} parent=5 // pred_check_branch
        %1008 = sbr.rel (%p1006) target = $region52
      $region51: #{tpu_custom_call.1} parent=5 // pred_region
        %s1009 = ssub.s32 %s16, 2
        // Predicated region
        $region53: #{tpu_custom_call.1} parent=51 // pred_check
          %p1010 = pneg %p113
        $region54: #{tpu_custom_call.1} parent=51 // pred_check_branch
          %1012 = sbr.rel (%p1010) target = $region56
        $region55: #{tpu_custom_call.1} parent=51 // pred_region
          %s1013 = sand.u32 %s98, 1
          %s1014 = scalar_lea.sflag [#allocation4], %s1013
          %s1015 = sand.u32 %s98, 1
          %s1016 = smul.addr %s1015, 16
          %s1017 = scalar_lea.vmem [#allocation8], %s1016
          %1018 = dma.done %s1014, 256
        $region56: #{tpu_custom_call.1} parent=51 // pred_fallthru
          _
      $region52: #{tpu_custom_call.1} parent=5 // pred_fallthru
        _
    $region6: #{tpu_custom_call.1} parent=1 // loop_footer
      %s20 = sadd.s32 1, %s16
    $region7: #{tpu_custom_call.1} parent=1 // loop_footer_branch
      %15 = sbr.rel target = $region3
    $region8: #{tpu_custom_call.1} parent=1 // loop_exit
      _
    %1019 = vsyncpa [#allocation3], 1
    %s1020 = scalar_lea.sflag [#allocation3], 1
    %1021 = vsyncpa %s1020, 1
    %1022 = vsyncpa [#allocation6], 1
    %1023 = vsyncpa [#allocation4], 1
    %s1024 = scalar_lea.sflag [#allocation4], 1
    %1025 = vsyncpa %s1024, 1

</llo_original>
